<compile_context>
chip_gen: v7x
topology: tpu7x:2x2x1
jax: 0.10.0
libtpu: 0.0.40
codegen_flags: <defaults>
</compile_context>

<pallas_src>
import functools
import math

import jax
import jax.numpy as jnp
from jax.experimental import pallas as pl
from jax.experimental.pallas import tpu as pltpu


def _catlin_kernel(x1_ref, x2_ref, w1_ref, w2_ref, o_ref, *, architecture):
    # x refs: (C_k, tile_m)  (batch dim squeezed);  w refs: (C_out, C_k)
    # y = W @ cat(x1, x2) == W1 @ x1 + W2 @ x2   (f32 accumulate)
    acc = jnp.dot(w1_ref[...], x1_ref[...], preferred_element_type=jnp.float32)
    acc = acc + jnp.dot(w2_ref[...], x2_ref[...], preferred_element_type=jnp.float32)
    if architecture == "progan":          # LeakyReLU(0.2)
        out = jnp.where(acc > 0, acc, 0.2 * acc)
    elif architecture == "hdcgan":        # SELU
        alpha = 1.6732632423543772
        scale = 1.0507009873554805
        out = scale * jnp.where(acc > 0, acc, alpha * (jnp.exp(acc) - 1.0))
    else:
        raise ValueError(f"unknown architecture: {architecture}")
    o_ref[...] = out.astype(o_ref.dtype)


def _pick_tile(hw, max_tile=4096):
    """Largest lane-aligned spatial tile dividing hw (full extent if hw small/unaligned)."""
    if hw % 128 != 0 or hw <= max_tile:
        return hw                         # full-extent block is always legal
    t = (max_tile // 128) * 128
    while hw % t != 0:
        t -= 128
    return t


def cat_lin_combiner(x1, x2, weight, *, architecture="progan", max_tile=4096):
    """x1: (N, C_in, H, W), x2: (N, C_img, H, W), weight: (C_out, C_in+C_img, 1, 1)."""
    N, C_in, H, W = x1.shape
    _, C_img, _, _ = x2.shape
    C_out = weight.shape[0]
    HW = H * W
    tile_m = _pick_tile(HW, max_tile)

    # NCHW -> (N, C, H*W): metadata-only reshape (H*W is contiguous), no transpose.
    x1f = x1.reshape(N, C_in, HW)
    x2f = x2.reshape(N, C_img, HW)

    # Split the 1x1-conv weight into the two concat halves, kept as (C_out, C_k).
    w = weight[:, :, 0, 0]                # (C_out, C_in + C_img)
    w1 = w[:, :C_in]                      # (C_out, C_in)
    w2 = w[:, C_in:]                      # (C_out, C_img)

    cost = pl.CostEstimate(
        flops=2 * N * HW * (C_in + C_img) * C_out,
        transcendentals=0 if architecture == "progan" else N * HW * C_out,
        bytes_accessed=4 * (N * HW * (C_in + C_img + C_out) + (C_in + C_img) * C_out),
    )

    kernel = functools.partial(_catlin_kernel, architecture=architecture)

    out_flat = pl.pallas_call(
        kernel,
        out_shape=jax.ShapeDtypeStruct((N, C_out, HW), x1.dtype),
        grid_spec=pltpu.PrefetchScalarGridSpec(
            num_scalar_prefetch=0,
            grid=(N, HW // tile_m),
            in_specs=[
                pl.BlockSpec((None, C_in, tile_m), lambda n, m: (n, 0, m)),
                pl.BlockSpec((None, C_img, tile_m), lambda n, m: (n, 0, m)),
                pl.BlockSpec((C_out, C_in), lambda n, m: (0, 0)),
                pl.BlockSpec((C_out, C_img), lambda n, m: (0, 0)),
            ],
            out_specs=pl.BlockSpec((None, C_out, tile_m), lambda n, m: (n, 0, m)),
        ),
        compiler_params=pltpu.CompilerParams(
            dimension_semantics=("parallel", "parallel")),
        cost_estimate=cost,
    )(x1f, x2f, w1, w2)

    # (N, C_out, H*W) -> NCHW: metadata-only reshape.
    return out_flat.reshape(N, C_out, H, W)


def _reference(x1, x2, weight, architecture="progan"):
    x = jnp.concatenate([x1, x2], axis=1)                 # (N, C_in+C_img, H, W)
    w = weight[:, :, 0, 0]                                # (C_out, C_tot)
    y = jnp.einsum("nchw,oc->nohw", x, w)
    if architecture == "progan":
        return jnp.where(y > 0, y, 0.2 * y)
    alpha = 1.6732632423543772
    scale = 1.0507009873554805
    return scale * jnp.where(y > 0, y, alpha * (jnp.exp(y) - 1.0))


if __name__ == "__main__":
    key = jax.random.PRNGKey(0)
    k1, k2, kw = jax.random.split(key, 3)

    # Small shapes consistent with the module: in_channels=4, image_channels=3.
    N, C_in, C_img, H, W = 2, 4, 3, 16, 16
    C_out = C_in  # Conv2d(in_channels + image_channels -> in_channels)

    x1 = jax.random.normal(k1, (N, C_in, H, W), dtype=jnp.float32)
    x2 = jax.random.normal(k2, (N, C_img, H, W), dtype=jnp.float32)

    # Deterministic init mimicking PyTorch Conv2d default (kaiming_uniform, a=sqrt(5)):
    # uniform in [-1/sqrt(fan_in), 1/sqrt(fan_in)] with fan_in = C_in + C_img.
    fan_in = C_in + C_img
    bound = 1.0 / math.sqrt(fan_in)
    weight = jax.random.uniform(
        kw, (C_out, C_in + C_img, 1, 1), dtype=jnp.float32,
        minval=-bound, maxval=bound)

    out = cat_lin_combiner(x1, x2, weight, architecture="progan")
    out = jax.block_until_ready(out)

    ref = _reference(x1, x2, weight, architecture="progan")
    assert out.shape == (N, C_out, H, W)
    assert jnp.allclose(out, ref, atol=1e-5, rtol=1e-5), "mismatch vs reference"

    print("KERNEL_OK")
</pallas_src>

<mosaic_0001>
module attributes {stable_mosaic.version = 11 : i64} {
  func.func @_catlin_kernel(%arg0: i32, %arg1: i32, %arg2: memref<1x4x256xf32, #tpu.memory_space<vmem>>, %arg3: memref<1x3x256xf32, #tpu.memory_space<vmem>>, %arg4: memref<4x4xf32, #tpu.memory_space<vmem>>, %arg5: memref<4x3xf32, #tpu.memory_space<vmem>>, %arg6: memref<1x4x256xf32, #tpu.memory_space<vmem>>) attributes {dimension_semantics = [#tpu.dimension_semantics<parallel>, #tpu.dimension_semantics<parallel>], iteration_bounds = array<i64: 2, 1>, scalar_prefetch = 0 : i64, scratch_operands = 0 : i64, tpu.core_type = #tpu.core_type<tc>, window_params = [{transform_indices = @transform_0, window_bounds = array<i64: 1, 4, 256>}, {transform_indices = @transform_1, window_bounds = array<i64: 1, 3, 256>}, {pipeline_mode = #tpu.pipeline_mode<synchronous>, transform_indices = @transform_2, window_bounds = array<i64: 4, 4>}, {pipeline_mode = #tpu.pipeline_mode<synchronous>, transform_indices = @transform_3, window_bounds = array<i64: 4, 3>}, {transform_indices = @transform_4, window_bounds = array<i64: 1, 4, 256>}]} {
    %c0 = arith.constant 0 : index
    %c0_0 = arith.constant 0 : index
    %0 = vector.load %arg4[%c0, %c0_0] : memref<4x4xf32, #tpu.memory_space<vmem>>, vector<4x4xf32>
    %c0_1 = arith.constant 0 : index
    %c0_2 = arith.constant 0 : index
    %c0_3 = arith.constant 0 : index
    %1 = vector.load %arg2[%c0_1, %c0_2, %c0_3] : memref<1x4x256xf32, #tpu.memory_space<vmem>>, vector<1x4x256xf32>
    %2 = vector.shape_cast %1 : vector<1x4x256xf32> to vector<4x256xf32>
    %cst = arith.constant dense<0.000000e+00> : vector<4x256xf32>
    %3 = tpu.matmul %0, %2, %cst {dimension_numbers = #tpu.dot_dimension_numbers<[1], [0], [0], [1], [0, 0, 1, 1], [], []>} : vector<4x4xf32>, vector<4x256xf32>, vector<4x256xf32> -> vector<4x256xf32>
    %c0_4 = arith.constant 0 : index
    %c0_5 = arith.constant 0 : index
    %4 = vector.load %arg5[%c0_4, %c0_5] : memref<4x3xf32, #tpu.memory_space<vmem>>, vector<4x3xf32>
    %c0_6 = arith.constant 0 : index
    %c0_7 = arith.constant 0 : index
    %c0_8 = arith.constant 0 : index
    %5 = vector.load %arg3[%c0_6, %c0_7, %c0_8] : memref<1x3x256xf32, #tpu.memory_space<vmem>>, vector<1x3x256xf32>
    %6 = vector.shape_cast %5 : vector<1x3x256xf32> to vector<3x256xf32>
    %cst_9 = arith.constant dense<0.000000e+00> : vector<4x256xf32>
    %7 = tpu.matmul %4, %6, %cst_9 {dimension_numbers = #tpu.dot_dimension_numbers<[1], [0], [0], [1], [0, 0, 1, 1], [], []>} : vector<4x3xf32>, vector<3x256xf32>, vector<4x256xf32> -> vector<4x256xf32>
    %8 = arith.addf %3, %7 : vector<4x256xf32>
    %cst_10 = arith.constant 0.000000e+00 : f32
    %9 = vector.broadcast %cst_10 : f32 to vector<4x256xf32>
    %10 = arith.cmpf ogt, %8, %9 : vector<4x256xf32>
    %cst_11 = arith.constant 2.000000e-01 : f32
    %11 = vector.broadcast %cst_11 : f32 to vector<4x256xf32>
    %12 = arith.mulf %11, %8 : vector<4x256xf32>
    %13 = arith.select %10, %8, %12 : vector<4x256xi1>, vector<4x256xf32>
    %c0_12 = arith.constant 0 : index
    %c0_13 = arith.constant 0 : index
    %c0_14 = arith.constant 0 : index
    %14 = vector.load %arg6[%c0_12, %c0_13, %c0_14] : memref<1x4x256xf32, #tpu.memory_space<vmem>>, vector<1x4x256xf32>
    %15 = vector.shape_cast %14 : vector<1x4x256xf32> to vector<4x256xf32>
    %16 = vector.shape_cast %13 : vector<4x256xf32> to vector<1x4x256xf32>
    tpu.vector_store %arg6[%c0_12, %c0_13, %c0_14], %16 {strides = array<i32>} : memref<1x4x256xf32, #tpu.memory_space<vmem>>, vector<1x4x256xf32>,
    return
  }
  func.func @transform_0(%arg0: i32, %arg1: i32) -> (i32, i32, i32) {
    %c0_i32 = arith.constant 0 : i32
    %c0_i32_0 = arith.constant 0 : i32
    return %arg0, %c0_i32, %arg1 : i32, i32, i32
  }
  func.func @transform_1(%arg0: i32, %arg1: i32) -> (i32, i32, i32) {
    %c0_i32 = arith.constant 0 : i32
    %c0_i32_0 = arith.constant 0 : i32
    return %arg0, %c0_i32, %arg1 : i32, i32, i32
  }
  func.func @transform_2(%arg0: i32, %arg1: i32) -> (i32, i32) {
    %c0_i32 = arith.constant 0 : i32
    %c0_i32_0 = arith.constant 0 : i32
    %c0_i32_1 = arith.constant 0 : i32
    return %c0_i32, %c0_i32_0 : i32, i32
  }
  func.func @transform_3(%arg0: i32, %arg1: i32) -> (i32, i32) {
    %c0_i32 = arith.constant 0 : i32
    %c0_i32_0 = arith.constant 0 : i32
    %c0_i32_1 = arith.constant 0 : i32
    return %c0_i32, %c0_i32_0 : i32, i32
  }
  func.func @transform_4(%arg0: i32, %arg1: i32) -> (i32, i32, i32) {
    %c0_i32 = arith.constant 0 : i32
    %c0_i32_0 = arith.constant 0 : i32
    return %arg0, %c0_i32, %arg1 : i32, i32, i32
  }
}

</mosaic_0001>

<llo_original>
// kernel: tpu_custom_call.1
$region0: #{tpu_custom_call.1}
  #allocation0 [shape = 'u32[]', space=smem, size = 0x4, offset = 0x4, fixed_abs, tag = 'smem constant byte address 0x4 - core index']
  #allocation1 [shape = 'u32[144,128]{1,0:T(1,128)}', space=vmem, size = 0x12000, scoped, tag = 'internal scratch']
  %s0 = inlined_call_operand.vmem [shape: f32[2,4,256], index: 0, kind: input, shape index: {}]
  %s1 = inlined_call_operand.vmem [shape: f32[2,3,256], index: 1, kind: input, shape index: {}]
  %s2 = inlined_call_operand.vmem [shape: f32[4,4], index: 2, kind: input, shape index: {}]
  %s3 = inlined_call_operand.vmem [shape: f32[4,3], index: 3, kind: input, shape index: {}]
  %s4 = inlined_call_operand.hbm [shape: f32[2,4,256], index: 4, kind: output, shape index: {}]
  %s5 = sld [smem:[#allocation0]]
  $region49: #{tpu_custom_call.1} parent=0
    _
  %s7 = ssub.s32 1, %s5
  %s8 = scalar_select 0, %s7, %s5
  $region1: #{tpu_custom_call.1} parent=0
    #allocation2 [shape = 'u8[8192]{0}', space=vmem, size = 0x2000, scoped, tag = 'output window, operand 0']
    #allocation3 [shape = 's32[2]{0}', space=sflag, size = 0x8, scoped, tag = 'scoped memory for tpu_custom_call.1']
    %9 = vsyncpa [#allocation3], 0
    %s10 = scalar_lea.sflag [#allocation3], 1
    %11 = vsyncpa %s10, 0
    loop: start=0, step=1, limit=4
    $region2: #{tpu_custom_call.1} parent=1 // loop_pre_header
      _
    $region3: #{tpu_custom_call.1} parent=1 // loop_header
      %s13 = sphi 0, %s17
      %p14 = scmp.ge.s32.totalorder %s13, 4
      %s20 = sphi 0, %s32
      %s21 = sphi 0, %s28
      %s22 = sphi 0, %s20
      %s23 = sphi 0, %s21
      %s24 = sphi 0, %s22
      %s25 = sphi 0, %s23
      %s37 = sphi 0, %s39
      %s40 = sphi 0, %s37
      %s41 = sphi 0, %s40
      %s57 = sphi 0, %s41
      %s65 = sphi 0, %s67
      %s68 = sphi 0, %s65
      %s69 = sphi 0, %s68
      %s85 = sphi 0, %s69
      %s89 = sphi 0, %s89
      %s91 = sphi 0, %s89
      %s92 = sphi 0, %s91
      %s106 = sphi 0, %s92
      %s110 = sphi 0, %s110
      %s112 = sphi 0, %s110
      %s113 = sphi 0, %s112
      %s127 = sphi 0, %s113
      %s135 = sphi 0, %s137
      %s138 = sphi 0, %s135
      %s139 = sphi 0, %s138
      %s155 = sphi 0, %s139
    $region4: #{tpu_custom_call.1} parent=1 // loop_header_branch
      %16 = sbr.rel (%p14) target = $region8
    $region5: #{tpu_custom_call.1} parent=1 // loop_body
      %s18 = ssub.s32 %s13, 1
      %s19 = ssub.s32 %s13, 2
      %s26 = sadd.s32 1, %s21
      %p27 = scmp.ge.s32.totalorder %s26, 1
      %s28 = scalar_select %p27, 0, %s26
      %s29 = sadd.s32 1, %s20
      %s30 = scalar_select %p27, %s29, %s20
      %p31 = scmp.ge.s32.totalorder %s30, 2
      %s32 = scalar_select %p31, 0, %s30
      %s33 = ssub.s32 %s20, %s32
      %s34 = ssub.s32 %s21, %s28
      %s35 = sor.u32 %s33, %s34
      %p36 = scmp.eq.s32.totalorder %s35, 0
      %s38 = sadd.s32 %s37, 1
      %s39 = scalar_select %p36, %s37, %s38
      %p42 = pneg %p36
      %p43 = scmp.eq.s32.totalorder %s13, 1
      %p44 = por %p42, %p43
      %p45 = scmp.ne.s32.totalorder %s37, %s40
      %p46 = scmp.eq.s32.totalorder %s13, 0
      %p47 = por %p45, %p46
      %p48 = scmp.ne.s32.totalorder %s37, %s40
      %p49 = scmp.eq.s32.totalorder %s18, 1
      %p50 = por %p48, %p49
      %p51 = scmp.ne.s32.totalorder %s40, %s41
      %p52 = scmp.eq.s32.totalorder %s18, 0
      %p53 = por %p51, %p52
      %p54 = scmp.ne.s32.totalorder %s40, %s41
      %p55 = scmp.eq.s32.totalorder %s19, 1
      %p56 = por %p54, %p55
      %p58 = scmp.ne.s32.totalorder %s41, %s57
      %p59 = scmp.eq.s32.totalorder %s19, 0
      %p60 = por %p58, %p59
      %s61 = ssub.s32 %s20, %s32
      %s62 = ssub.s32 %s21, %s28
      %s63 = sor.u32 %s61, %s62
      %p64 = scmp.eq.s32.totalorder %s63, 0
      %s66 = sadd.s32 %s65, 1
      %s67 = scalar_select %p64, %s65, %s66
      %p70 = pneg %p64
      %p71 = scmp.eq.s32.totalorder %s13, 1
      %p72 = por %p70, %p71
      %p73 = scmp.ne.s32.totalorder %s65, %s68
      %p74 = scmp.eq.s32.totalorder %s13, 0
      %p75 = por %p73, %p74
      %p76 = scmp.ne.s32.totalorder %s65, %s68
      %p77 = scmp.eq.s32.totalorder %s18, 1
      %p78 = por %p76, %p77
      %p79 = scmp.ne.s32.totalorder %s68, %s69
      %p80 = scmp.eq.s32.totalorder %s18, 0
      %p81 = por %p79, %p80
      %p82 = scmp.ne.s32.totalorder %s68, %s69
      %p83 = scmp.eq.s32.totalorder %s19, 1
      %p84 = por %p82, %p83
      %p86 = scmp.ne.s32.totalorder %s69, %s85
      %p87 = scmp.eq.s32.totalorder %s19, 0
      %p88 = por %p86, %p87
      %s90 = sadd.s32 %s89, 1
      %p93 = scmp.eq.s32.totalorder %s13, 1
      %p94 = scmp.ne.s32.totalorder %s89, %s91
      %p95 = scmp.eq.s32.totalorder %s13, 0
      %p96 = por %p94, %p95
      %p97 = scmp.ne.s32.totalorder %s89, %s91
      %p98 = scmp.eq.s32.totalorder %s18, 1
      %p99 = por %p97, %p98
      %p100 = scmp.ne.s32.totalorder %s91, %s92
      %p101 = scmp.eq.s32.totalorder %s18, 0
      %p102 = por %p100, %p101
      %p103 = scmp.ne.s32.totalorder %s91, %s92
      %p104 = scmp.eq.s32.totalorder %s19, 1
      %p105 = por %p103, %p104
      %p107 = scmp.ne.s32.totalorder %s92, %s106
      %p108 = scmp.eq.s32.totalorder %s19, 0
      %p109 = por %p107, %p108
      %s111 = sadd.s32 %s110, 1
      %p114 = scmp.eq.s32.totalorder %s13, 1
      %p115 = scmp.ne.s32.totalorder %s110, %s112
      %p116 = scmp.eq.s32.totalorder %s13, 0
      %p117 = por %p115, %p116
      %p118 = scmp.ne.s32.totalorder %s110, %s112
      %p119 = scmp.eq.s32.totalorder %s18, 1
      %p120 = por %p118, %p119
      %p121 = scmp.ne.s32.totalorder %s112, %s113
      %p122 = scmp.eq.s32.totalorder %s18, 0
      %p123 = por %p121, %p122
      %p124 = scmp.ne.s32.totalorder %s112, %s113
      %p125 = scmp.eq.s32.totalorder %s19, 1
      %p126 = por %p124, %p125
      %p128 = scmp.ne.s32.totalorder %s113, %s127
      %p129 = scmp.eq.s32.totalorder %s19, 0
      %p130 = por %p128, %p129
      %s131 = ssub.s32 %s20, %s32
      %s132 = ssub.s32 %s21, %s28
      %s133 = sor.u32 %s131, %s132
      %p134 = scmp.eq.s32.totalorder %s133, 0
      %s136 = sadd.s32 %s135, 1
      %s137 = scalar_select %p134, %s135, %s136
      %p140 = pneg %p134
      %p141 = scmp.eq.s32.totalorder %s13, 1
      %p142 = por %p140, %p141
      %p143 = scmp.ne.s32.totalorder %s135, %s138
      %p144 = scmp.eq.s32.totalorder %s13, 0
      %p145 = por %p143, %p144
      %p146 = scmp.ne.s32.totalorder %s135, %s138
      %p147 = scmp.eq.s32.totalorder %s18, 1
      %p148 = por %p146, %p147
      %p149 = scmp.ne.s32.totalorder %s138, %s139
      %p150 = scmp.eq.s32.totalorder %s18, 0
      %p151 = por %p149, %p150
      %p152 = scmp.ne.s32.totalorder %s138, %s139
      %p153 = scmp.eq.s32.totalorder %s19, 1
      %p154 = por %p152, %p153
      %p156 = scmp.ne.s32.totalorder %s139, %s155
      %p157 = scmp.eq.s32.totalorder %s19, 0
      %p158 = por %p156, %p157
      %p159 = scmp.le.s32.totalorder 1, %s13
      %p160 = scmp.lt.s32.totalorder %s13, 3
      %p161 = pnand %p159, %p160
      %p162 = pneg %p161
      // Predicated region
      $region9: #{tpu_custom_call.1} parent=5 // pred_check
        _
      $region10: #{tpu_custom_call.1} parent=5 // pred_check_branch
        %164 = sbr.rel (%p161) target = $region12
      $region11: #{tpu_custom_call.1} parent=5 // pred_region
        %s165 = ssub.s32 %s13, 1
        // Predicated region
        $region13: #{tpu_custom_call.1} parent=11 // pred_check
          %p166 = pneg %p102
        $region14: #{tpu_custom_call.1} parent=11 // pred_check_branch
          %168 = sbr.rel (%p166) target = $region16
        $region15: #{tpu_custom_call.1} parent=11 // pred_region
          _
        $region16: #{tpu_custom_call.1} parent=11 // pred_fallthru
          _
        // Predicated region
        $region17: #{tpu_custom_call.1} parent=11 // pred_check
          %p169 = pneg %p123
        $region18: #{tpu_custom_call.1} parent=11 // pred_check_branch
          %171 = sbr.rel (%p169) target = $region20
        $region19: #{tpu_custom_call.1} parent=11 // pred_region
          _
        $region20: #{tpu_custom_call.1} parent=11 // pred_fallthru
          _
      $region12: #{tpu_custom_call.1} parent=5 // pred_fallthru
        _
      %p172 = scmp.lt.s32.totalorder %s13, 2
      // Predicated region
      $region21: #{tpu_custom_call.1} parent=5 // pred_check
        %p173 = pneg %p172
      $region22: #{tpu_custom_call.1} parent=5 // pred_check_branch
        %175 = sbr.rel (%p173) target = $region24
      $region23: #{tpu_custom_call.1} parent=5 // pred_region
        // Predicated region
        $region25: #{tpu_custom_call.1} parent=23 // pred_check
          %p176 = pneg %p47
        $region26: #{tpu_custom_call.1} parent=23 // pred_check_branch
          %178 = sbr.rel (%p176) target = $region28
        $region27: #{tpu_custom_call.1} parent=23 // pred_region
          %s179 = smul.u32 2, %s21
          %p180 = scmp.lt.s32.totalorder %s20, 1
          %s181 = scalar_select %p180, %s20, 1
          %p182 = scmp.lt.s32.totalorder %s179, 1
          %s183 = scalar_select %p182, %s179, 1
          %s184 = smul.addr %s181, 2
          %s185 = sadd.s32 %s183, %s184
          %s186 = smul.addr %s185, 4
          %s187 = scalar_lea.vmem %s0, %s186
          %s188 = smul.u32 2, %s21
        $region28: #{tpu_custom_call.1} parent=23 // pred_fallthru
          _
        // Predicated region
        $region29: #{tpu_custom_call.1} parent=23 // pred_check
          %p189 = pneg %p75
        $region30: #{tpu_custom_call.1} parent=23 // pred_check_branch
          %191 = sbr.rel (%p189) target = $region32
        $region31: #{tpu_custom_call.1} parent=23 // pred_region
          %s192 = smul.u32 2, %s21
          %p193 = scmp.lt.s32.totalorder %s20, 1
          %s194 = scalar_select %p193, %s20, 1
          %p195 = scmp.lt.s32.totalorder %s192, 1
          %s196 = scalar_select %p195, %s192, 1
          %s197 = smul.addr %s194, 2
          %s198 = sadd.s32 %s196, %s197
          %s199 = smul.addr %s198, 4
          %s200 = scalar_lea.vmem %s1, %s199
          %s201 = smul.u32 2, %s21
        $region32: #{tpu_custom_call.1} parent=23 // pred_fallthru
          _
      $region24: #{tpu_custom_call.1} parent=5 // pred_fallthru
        _
      %p202 = scmp.le.s32.totalorder 1, %s13
      %p203 = scmp.lt.s32.totalorder %s13, 3
      %p204 = pnand %p202, %p203
      %p205 = pneg %p204
      // Predicated region
      $region33: #{tpu_custom_call.1} parent=5 // pred_check
        _
      $region34: #{tpu_custom_call.1} parent=5 // pred_check_branch
        %207 = sbr.rel (%p204) target = $region36
      $region35: #{tpu_custom_call.1} parent=5 // pred_region
        %s208 = ssub.s32 %s13, 1
        %s209 = smul.u32 2, %s23
        %p210 = scmp.lt.s32.totalorder %s22, 1
        %s211 = scalar_select %p210, %s22, 1
        %p212 = scmp.lt.s32.totalorder %s209, 1
        %s213 = scalar_select %p212, %s209, 1
        %s214 = smul.addr %s211, 2
        %s215 = sadd.s32 %s213, %s214
        %s216 = smul.addr %s215, 4
        %s217 = scalar_lea.vmem %s0, %s216
        %p218 = pneg %p53
        %p219 = pneg %p50
        %s220 = smul.u32 2, %s23
        %p221 = scmp.lt.s32.totalorder %s22, 1
        %s222 = scalar_select %p221, %s22, 1
        %p223 = scmp.lt.s32.totalorder %s220, 1
        %s224 = scalar_select %p223, %s220, 1
        %s225 = smul.addr %s222, 2
        %s226 = sadd.s32 %s224, %s225
        %s227 = smul.addr %s226, 4
        %s228 = scalar_lea.vmem %s1, %s227
        %p229 = pneg %p81
        %p230 = pneg %p78
        %p231 = pneg %p102
        %p232 = pneg %p99
        %p233 = pneg %p123
        %p234 = pneg %p120
        %p235 = pneg %p151
        %p236 = pneg %p148
        %s237 = sand.u32 %s138, 1
        %s238 = scalar_lea.sflag [#allocation3], %s237
        %s239 = sand.u32 %s138, 1
        %s240 = smul.addr %s239, 8
        %s241 = scalar_lea.vmem [#allocation2], %s240
        %s242 = smul.u32 2, %s23
        %p243 = scmp.lt.s32.totalorder %s22, 1
        %s244 = scalar_select %p243, %s22, 1
        %p245 = scmp.lt.s32.totalorder %s242, 1
        %s246 = scalar_select %p245, %s242, 1
        %s247 = smul.addr %s244, 2
        %s248 = sadd.s32 %s246, %s247
        %s249 = smul.addr %s248, 4
        %s250 = scalar_lea.vmem %s0, %s249
        %s251 = smul.u32 2, %s23
        %s252 = smul.u32 2, %s23
        %p253 = scmp.lt.s32.totalorder %s22, 1
        %s254 = scalar_select %p253, %s22, 1
        %p255 = scmp.lt.s32.totalorder %s252, 1
        %s256 = scalar_select %p255, %s252, 1
        %s257 = smul.addr %s254, 2
        %s258 = sadd.s32 %s256, %s257
        %s259 = smul.addr %s258, 4
        %s260 = scalar_lea.vmem %s1, %s259
        %s261 = smul.u32 2, %s23
        %s262 = smul.u32 2, %s23
        %v263 = vld [vmem:[%s2] sm:$0xf]
        %v264 = vld [vmem:[%s250] sm:$0xff]
        %v265 = vld [vmem:[%s3] sm:$0xf]
        %v266 = vld [vmem:[%s260] sm:$0x77]
        %v268 = vcombine.high %v266, %v266
        %vm269 = vcmask 23552
        %v271 = vsel %vm269, %v265, 0
        %vm273 = vcmask 1042432
        %v274 = vsel %vm273, %v266, 0
        %v276 = vsel %vm273, %v268, 0
        %278 = vmatprep.subr.mxu0 %v276
        %279 = vmatpush1.msra.mxu0 %v274
        %280 = vmatprep.subr.mxu0 0.0
        %281 = vmatpush1.msra.mxu0 0.0
        %282 = vmatprep.subr.mxu0 0.0
        %283 = vmatpush1.msra.mxu0 0.0
        %284 = vmatprep.subr.mxu0 0.0
        %285 = vmatpush1.msra.mxu0 0.0
        %286 = vmatprep.subr.mxu0 0.0
        %287 = vmatpush1.msra.mxu0 0.0
        %288 = vmatprep.subr.mxu0 0.0
        %289 = vmatpush1.msra.mxu0 0.0
        %290 = vmatprep.subr.mxu0 0.0
        %291 = vmatpush1.msra.mxu0 0.0
        %292 = vmatprep.subr.mxu0 0.0
        %293 = vmatpush1.msra.mxu0 0.0
        %294 = vmatprep.subr.mxu0 0.0
        %295 = vmatpush1.msra.mxu0 0.0
        %296 = vmatprep.subr.mxu0 0.0
        %297 = vmatpush1.msra.mxu0 0.0
        %298 = vmatprep.subr.mxu0 0.0
        %299 = vmatpush1.msra.mxu0 0.0
        %300 = vmatprep.subr.mxu0 0.0
        %301 = vmatpush1.msra.mxu0 0.0
        %302 = vmatprep.subr.mxu0 0.0
        %303 = vmatpush1.msra.mxu0 0.0
        %304 = vmatprep.subr.mxu0 0.0
        %305 = vmatpush1.msra.mxu0 0.0
        %306 = vmatprep.subr.mxu0 0.0
        %307 = vmatpush1.msra.mxu0 0.0
        %308 = vmatprep.subr.mxu0 0.0
        %309 = vmatpush1.msra.mxu0 0.0
        %310 = vmatprep.subr.mxu0 0.0
        %311 = vmatpush1.msra.mxu0 0.0
        %312 = vmatprep.subr.mxu0 0.0
        %313 = vmatpush1.msra.mxu0 0.0
        %314 = vmatprep.subr.mxu0 0.0
        %315 = vmatpush1.msra.mxu0 0.0
        %316 = vmatprep.subr.mxu0 0.0
        %317 = vmatpush1.msra.mxu0 0.0
        %318 = vmatprep.subr.mxu0 0.0
        %319 = vmatpush1.msra.mxu0 0.0
        %320 = vmatprep.subr.mxu0 0.0
        %321 = vmatpush1.msra.mxu0 0.0
        %322 = vmatprep.subr.mxu0 0.0
        %323 = vmatpush1.msra.mxu0 0.0
        %324 = vmatprep.subr.mxu0 0.0
        %325 = vmatpush1.msra.mxu0 0.0
        %326 = vmatprep.subr.mxu0 0.0
        %327 = vmatpush1.msra.mxu0 0.0
        %328 = vmatprep.subr.mxu0 0.0
        %329 = vmatpush1.msra.mxu0 0.0
        %330 = vmatprep.subr.mxu0 0.0
        %331 = vmatpush1.msra.mxu0 0.0
        %332 = vmatprep.subr.mxu0 0.0
        %333 = vmatpush1.msra.mxu0 0.0
        %334 = vmatprep.subr.mxu0 0.0
        %335 = vmatpush1.msra.mxu0 0.0
        %336 = vmatprep.subr.mxu0 0.0
        %337 = vmatpush1.msra.mxu0 0.0
        %338 = vmatprep.subr.mxu0 0.0
        %339 = vmatpush1.msra.mxu0 0.0
        %340 = vmatprep.subr.mxu0 0.0
        %341 = vmatpush1.msra.mxu0 0.0
        %342 = vmatprep.mubr.f32.mxu0 0.0
        %343 = vmatmul.mubr.f32.gmra.mrb[0].mxu0 %v271
        %v344 = vpop.f32.mrb[0].mxu0
        %v345 = vadd.f32 0.0, %v344
        %v346 = vpop.f32.mrb[0].mxu0
        %v347 = vadd.f32 0.0, %v346
        %348 = vdwg.mxu0
        %v350 = vcombine.high %v264, %v264
        %vm351 = vcmask 31744
        %v353 = vsel %vm351, %v263, 0
        %vm355 = vcmask 1043456
        %v356 = vsel %vm355, %v264, 0
        %v358 = vsel %vm355, %v350, 0
        %360 = vmatprep.subr.mxu0 %v358
        %361 = vmatpush1.msra.mxu0 %v356
        %362 = vmatprep.subr.mxu0 0.0
        %363 = vmatpush1.msra.mxu0 0.0
        %364 = vmatprep.subr.mxu0 0.0
        %365 = vmatpush1.msra.mxu0 0.0
        %366 = vmatprep.subr.mxu0 0.0
        %367 = vmatpush1.msra.mxu0 0.0
        %368 = vmatprep.subr.mxu0 0.0
        %369 = vmatpush1.msra.mxu0 0.0
        %370 = vmatprep.subr.mxu0 0.0
        %371 = vmatpush1.msra.mxu0 0.0
        %372 = vmatprep.subr.mxu0 0.0
        %373 = vmatpush1.msra.mxu0 0.0
        %374 = vmatprep.subr.mxu0 0.0
        %375 = vmatpush1.msra.mxu0 0.0
        %376 = vmatprep.subr.mxu0 0.0
        %377 = vmatpush1.msra.mxu0 0.0
        %378 = vmatprep.subr.mxu0 0.0
        %379 = vmatpush1.msra.mxu0 0.0
        %380 = vmatprep.subr.mxu0 0.0
        %381 = vmatpush1.msra.mxu0 0.0
        %382 = vmatprep.subr.mxu0 0.0
        %383 = vmatpush1.msra.mxu0 0.0
        %384 = vmatprep.subr.mxu0 0.0
        %385 = vmatpush1.msra.mxu0 0.0
        %386 = vmatprep.subr.mxu0 0.0
        %387 = vmatpush1.msra.mxu0 0.0
        %388 = vmatprep.subr.mxu0 0.0
        %389 = vmatpush1.msra.mxu0 0.0
        %390 = vmatprep.subr.mxu0 0.0
        %391 = vmatpush1.msra.mxu0 0.0
        %392 = vmatprep.subr.mxu0 0.0
        %393 = vmatpush1.msra.mxu0 0.0
        %394 = vmatprep.subr.mxu0 0.0
        %395 = vmatpush1.msra.mxu0 0.0
        %396 = vmatprep.subr.mxu0 0.0
        %397 = vmatpush1.msra.mxu0 0.0
        %398 = vmatprep.subr.mxu0 0.0
        %399 = vmatpush1.msra.mxu0 0.0
        %400 = vmatprep.subr.mxu0 0.0
        %401 = vmatpush1.msra.mxu0 0.0
        %402 = vmatprep.subr.mxu0 0.0
        %403 = vmatpush1.msra.mxu0 0.0
        %404 = vmatprep.subr.mxu0 0.0
        %405 = vmatpush1.msra.mxu0 0.0
        %406 = vmatprep.subr.mxu0 0.0
        %407 = vmatpush1.msra.mxu0 0.0
        %408 = vmatprep.subr.mxu0 0.0
        %409 = vmatpush1.msra.mxu0 0.0
        %410 = vmatprep.subr.mxu0 0.0
        %411 = vmatpush1.msra.mxu0 0.0
        %412 = vmatprep.subr.mxu0 0.0
        %413 = vmatpush1.msra.mxu0 0.0
        %414 = vmatprep.subr.mxu0 0.0
        %415 = vmatpush1.msra.mxu0 0.0
        %416 = vmatprep.subr.mxu0 0.0
        %417 = vmatpush1.msra.mxu0 0.0
        %418 = vmatprep.subr.mxu0 0.0
        %419 = vmatpush1.msra.mxu0 0.0
        %420 = vmatprep.subr.mxu0 0.0
        %421 = vmatpush1.msra.mxu0 0.0
        %422 = vmatprep.subr.mxu0 0.0
        %423 = vmatpush1.msra.mxu0 0.0
        %424 = vmatprep.mubr.f32.mxu0 0.0
        %425 = vmatmul.mubr.f32.gmra.mrb[0].mxu0 %v353
        %v426 = vpop.f32.mrb[0].mxu0
        %v427 = vadd.f32 %v345, %v426
        %v428 = vpop.f32.mrb[0].mxu0
        %v429 = vadd.f32 %v347, %v428
        %430 = vdwg.mxu0
        %vm431 = vcmp.gt.f32.partialorder %v427, 0.0
        %vm432 = vcmp.gt.f32.partialorder %v429, 0.0
        %v433 = vmul.f32 %v427, 0.2
        %v434 = vmul.f32 %v429, 0.2
        %v435 = vsel %vm431, %v427, %v433
        %v436 = vsel %vm432, %v429, %v434
        %v439 = vcombine.low %v435, %v436
        %441 = vst [vmem:[%s241] sm:$0xff] %v439
        %s442 = sand.u32 %s138, 1
        %s443 = scalar_lea.sflag [#allocation3], %s442
        %s444 = sand.u32 %s138, 1
        %s445 = smul.addr %s444, 8
        %s446 = scalar_lea.vmem [#allocation2], %s445
        // Predicated region
        $region37: #{tpu_custom_call.1} parent=35 // pred_check
          %p447 = pneg %p148
        $region38: #{tpu_custom_call.1} parent=35 // pred_check_branch
          %449 = sbr.rel (%p447) target = $region40
        $region39: #{tpu_custom_call.1} parent=35 // pred_region
          %s450 = smul.u32 2, %s23
          %s452 = ssub.s32 128, 128
          %453 = vsyncadd %s443, %s452
          %s454 = smul.addr %s22, 2
          %s455 = sadd.s32 %s450, %s454
          %s456 = smul.addr %s455, 64
          %s457 = scalar_lea.hbm %s4, %s456
          %s459 = sshll.u32 %s446, 4
          %s460 = int_to_ptr.vmem [resolvable:$true] %s459
          %462 = dma.vmem_to_hbm [thread:$0]  %s460, 128, %s457, %s443
        $region40: #{tpu_custom_call.1} parent=35 // pred_fallthru
          _
      $region36: #{tpu_custom_call.1} parent=5 // pred_fallthru
        _
      %p463 = scmp.le.s32.totalorder 2, %s13
      // Predicated region
      $region41: #{tpu_custom_call.1} parent=5 // pred_check
        %p464 = pneg %p463
      $region42: #{tpu_custom_call.1} parent=5 // pred_check_branch
        %466 = sbr.rel (%p464) target = $region44
      $region43: #{tpu_custom_call.1} parent=5 // pred_region
        %s467 = ssub.s32 %s13, 2
        // Predicated region
        $region45: #{tpu_custom_call.1} parent=43 // pred_check
          %p468 = pneg %p154
        $region46: #{tpu_custom_call.1} parent=43 // pred_check_branch
          %470 = sbr.rel (%p468) target = $region48
        $region47: #{tpu_custom_call.1} parent=43 // pred_region
          %s471 = sand.u32 %s139, 1
          %s472 = scalar_lea.sflag [#allocation3], %s471
          %s473 = sand.u32 %s139, 1
          %s474 = smul.addr %s473, 8
          %s475 = scalar_lea.vmem [#allocation2], %s474
          %476 = dma.done %s472, 128
        $region48: #{tpu_custom_call.1} parent=43 // pred_fallthru
          _
      $region44: #{tpu_custom_call.1} parent=5 // pred_fallthru
        _
    $region6: #{tpu_custom_call.1} parent=1 // loop_footer
      %s17 = sadd.s32 1, %s13
    $region7: #{tpu_custom_call.1} parent=1 // loop_footer_branch
      %12 = sbr.rel target = $region3
    $region8: #{tpu_custom_call.1} parent=1 // loop_exit
      _
    %477 = vsyncpa [#allocation3], 1
    %s478 = scalar_lea.sflag [#allocation3], 1
    %479 = vsyncpa %s478, 1

</llo_original>
